<compile_context>
chip_gen: v5e
topology: v5e:2x2
jax: 0.10.0
libtpu: 0.0.40
codegen_flags: <defaults>
</compile_context>

<pallas_src>
import jax
import jax.numpy as jnp
from jax import lax
from jax.experimental import pallas as pl
from jax.experimental.pallas import tpu as pltpu  # noqa: F401  (kept for TPU backend import parity)

# "env" constants the torch module reads (set deterministically in-script)
BATCH_SIZE = 2
IN_CHANNELS = 4
IMG_SIZE = 16
PATCH_SIZE = 4
EMBEDDING_DIMS = 32
NUM_OF_PATCHES = (IMG_SIZE // PATCH_SIZE) ** 2  # 16


def patch_embed_kernel(p_ref, w_ref, add_ref, o_ref):
    """Single invocation, whole problem in VMEM.

    p_ref   : (B*(N+1), K)  patch matrix; row b*(N+1) is all-zero (class-token slot)
    w_ref   : (K, E)        patch-projection weight
    add_ref : (B*(N+1), E)  fused addend (cls+pos for row 0, pos+bias for the rest)
    o_ref   : (B*(N+1), E)  output (reshaped to (B, N+1, E) in the wrapper)
    """
    emb = jnp.dot(p_ref[...], w_ref[...],
                  preferred_element_type=jnp.float32)       # MXU: (B*(N+1), E)
    o_ref[...] = (emb + add_ref[...]).astype(o_ref.dtype)   # single fused VPU pass


def patch_embedding_forward(x_nchw, conv_w, conv_b, class_token, pos_emb,
                            patch_size):
    """x_nchw: (B, C, H, W) float32. Returns (B, N+1, E) float32."""
    B, C, H, W = x_nchw.shape
    E = conv_w.shape[0]
    p = patch_size
    Hp, Wp = H // p, W // p
    N = Hp * Wp
    K = C * p * p
    M = B * (N + 1)

    # --- wrapper-side layout plumbing (cheap at this size) -------------------
    # Patch matrix in (c, ph, pw) order to match the flattened conv weight,
    # patches ordered row-major over (H', W') to match flatten(1, 2).
    patches = x_nchw.reshape(B, C, Hp, p, Wp, p)
    patches = patches.transpose(0, 2, 4, 1, 3, 5).reshape(B, N, K)
    # Prepend one zero row per batch for the class-token slot: 0 @ W == 0.
    patches_pad = jnp.pad(patches, ((0, 0), (1, 0), (0, 0)))
    patches_pad = patches_pad.reshape(M, K).astype(jnp.float32)

    w_mat = conv_w.reshape(E, K).T.astype(jnp.float32)       # (K, E)

    # Fused addend: row 0 of each batch = class_token + pos[0];
    #               rows 1..N           = pos[1..N] + conv bias.
    pos = pos_emb[0].astype(jnp.float32)                     # (N+1, E)
    row0 = class_token[:, 0, :].astype(jnp.float32) + pos[0] # (B, E)
    rest = pos[1:] + conv_b.astype(jnp.float32)[None, :]     # (N, E)
    addend = jnp.concatenate(
        [row0[:, None, :], jnp.broadcast_to(rest[None], (B, N, E))], axis=1
    ).reshape(M, E)

    # --- single-invocation Pallas call (no grid, everything fits VMEM) -------
    out_flat = pl.pallas_call(
        patch_embed_kernel,
        out_shape=jax.ShapeDtypeStruct((M, E), jnp.float32),
    )(patches_pad, w_mat, addend)

    return out_flat.reshape(B, N + 1, E)                     # metadata-only reshape


def reference_forward(x_nchw, conv_w, conv_b, class_token, pos_emb, patch_size):
    """Pure-JAX reference mirroring the PyTorch forward exactly."""
    conv = lax.conv_general_dilated(
        x_nchw, conv_w,
        window_strides=(patch_size, patch_size),
        padding="VALID",
        dimension_numbers=("NCHW", "OIHW", "NCHW"),
    ) + conv_b.reshape(1, -1, 1, 1)                          # (B, E, H', W')
    conv = conv.transpose(0, 2, 3, 1)                        # (B, H', W', E)
    B, Hp, Wp, E = conv.shape
    tokens = conv.reshape(B, Hp * Wp, E)                     # flatten dims 1-2
    out = jnp.concatenate([class_token, tokens], axis=1) + pos_emb
    return out


if __name__ == "__main__":
    key = jax.random.PRNGKey(0)
    k_x, k_w, k_b, k_cls, k_pos = jax.random.split(key, 5)

    B, C, H, W = BATCH_SIZE, IN_CHANNELS, IMG_SIZE, IMG_SIZE
    E, p, N = EMBEDDING_DIMS, PATCH_SIZE, NUM_OF_PATCHES

    x = jax.random.normal(k_x, (B, C, H, W), dtype=jnp.float32)

    # Deterministic synthetic parameters (no checkpoint load).
    fan_in = C * p * p
    bound = 1.0 / (fan_in ** 0.5)
    conv_w = jax.random.uniform(k_w, (E, C, p, p), jnp.float32, -bound, bound)
    conv_b = jax.random.uniform(k_b, (E,), jnp.float32, -bound, bound)
    class_token = jax.random.uniform(k_cls, (B, 1, E), jnp.float32)      # torch.rand
    pos_emb = jax.random.uniform(k_pos, (1, N + 1, E), jnp.float32)      # torch.rand

    out = patch_embedding_forward(x, conv_w, conv_b, class_token, pos_emb, p)
    out = jax.block_until_ready(out)

    ref = reference_forward(x, conv_w, conv_b, class_token, pos_emb, p)
    assert out.shape == (B, N + 1, E), out.shape
    assert jnp.allclose(out, ref, atol=1e-4, rtol=1e-4), \
        float(jnp.max(jnp.abs(out - ref)))

    print("KERNEL_OK")
</pallas_src>

<mosaic_0001>
module attributes {stable_mosaic.version = 11 : i64} {
  func.func @patch_embed_kernel(%arg0: memref<34x64xf32, #tpu.memory_space<vmem>>, %arg1: memref<64x32xf32, #tpu.memory_space<vmem>>, %arg2: memref<34x32xf32, #tpu.memory_space<vmem>>, %arg3: memref<34x32xf32, #tpu.memory_space<vmem>>) attributes {dimension_semantics = [], scalar_prefetch = 0 : i64, scratch_operands = 0 : i64, tpu.core_type = #tpu.core_type<tc>} {
    %c0 = arith.constant 0 : index
    %c0_0 = arith.constant 0 : index
    %0 = vector.load %arg0[%c0, %c0_0] : memref<34x64xf32, #tpu.memory_space<vmem>>, vector<34x64xf32>
    %c0_1 = arith.constant 0 : index
    %c0_2 = arith.constant 0 : index
    %1 = vector.load %arg1[%c0_1, %c0_2] : memref<64x32xf32, #tpu.memory_space<vmem>>, vector<64x32xf32>
    %cst = arith.constant dense<0.000000e+00> : vector<34x32xf32>
    %2 = tpu.matmul %0, %1, %cst {dimension_numbers = #tpu.dot_dimension_numbers<[1], [0], [0], [1], [0, 0, 1, 1], [], []>} : vector<34x64xf32>, vector<64x32xf32>, vector<34x32xf32> -> vector<34x32xf32>
    %c0_3 = arith.constant 0 : index
    %c0_4 = arith.constant 0 : index
    %3 = vector.load %arg2[%c0_3, %c0_4] : memref<34x32xf32, #tpu.memory_space<vmem>>, vector<34x32xf32>
    %4 = arith.addf %2, %3 : vector<34x32xf32>
    %c0_5 = arith.constant 0 : index
    %c0_6 = arith.constant 0 : index
    %5 = vector.load %arg3[%c0_5, %c0_6] : memref<34x32xf32, #tpu.memory_space<vmem>>, vector<34x32xf32>
    tpu.vector_store %arg3[%c0_5, %c0_6], %4 {strides = array<i32>} : memref<34x32xf32, #tpu.memory_space<vmem>>, vector<34x32xf32>,
    return
  }
}

</mosaic_0001>

<llo_original>
// kernel: tpu_custom_call.1
$region0: #{tpu_custom_call.1}
  #allocation0 [shape = 'u32[]', space=smem, size = 0x4, offset = 0x4, fixed_abs, tag = 'smem constant byte address 0x4 - core index']
  #allocation1 [shape = 'u32[72,128]{1,0:T(1,128)}', space=vmem, size = 0x9000, scoped, tag = 'internal scratch']
  %s0 = inlined_call_operand.vmem [shape: f32[34,64], index: 0, kind: input, shape index: {}]
  %s1 = inlined_call_operand.vmem [shape: f32[64,32], index: 1, kind: input, shape index: {}]
  %s2 = inlined_call_operand.vmem [shape: f32[34,32], index: 2, kind: input, shape index: {}]
  %s3 = inlined_call_operand.vmem [shape: f32[34,32], index: 3, kind: output, shape index: {}]
  %s4 = sld [smem:[#allocation0]]
  $region22: #{tpu_custom_call.1} parent=0
    _
  %s6 = ssub.s32 1, %s4
  %s7 = scalar_select 0, %s6, %s4
  // Predicated region
  $region2: #{tpu_custom_call.1} parent=0 // pred_check
    _
  $region3: #{tpu_custom_call.1} parent=0 // pred_check_branch
    %9 = sbr.rel (0) target = $region5
  $region4: #{tpu_custom_call.1} parent=0 // pred_region
    _
  $region5: #{tpu_custom_call.1} parent=0 // pred_fallthru
    _
  // Predicated region
  $region6: #{tpu_custom_call.1} parent=0 // pred_check
    _
  $region7: #{tpu_custom_call.1} parent=0 // pred_check_branch
    %11 = sbr.rel (0) target = $region9
  $region8: #{tpu_custom_call.1} parent=0 // pred_region
    _
  $region9: #{tpu_custom_call.1} parent=0 // pred_fallthru
    _
  // Predicated region
  $region10: #{tpu_custom_call.1} parent=0 // pred_check
    _
  $region11: #{tpu_custom_call.1} parent=0 // pred_check_branch
    %13 = sbr.rel (0) target = $region13
  $region12: #{tpu_custom_call.1} parent=0 // pred_region
    _
  $region13: #{tpu_custom_call.1} parent=0 // pred_fallthru
    _
  %v14 = vld [vmem:[%s0] sm:$0xff]
  %v15 = vld [vmem:[%s0 + $0x8] sm:$0xff]
  %v16 = vld [vmem:[%s0 + $0x10] sm:$0xff]
  %v17 = vld [vmem:[%s0 + $0x18] sm:$0xff]
  %v18 = vld [vmem:[%s0 + $0x20] sm:$0x3]
  %v19 = vld [vmem:[%s1] sm:$0xff]
  %v20 = vld [vmem:[%s1 + $0x8] sm:$0xff]
  %v21 = vld [vmem:[%s1 + $0x10] sm:$0xff]
  %v22 = vld [vmem:[%s1 + $0x18] sm:$0xff]
  %v23 = vld [vmem:[%s1 + $0x20] sm:$0xff]
  %v24 = vld [vmem:[%s1 + $0x28] sm:$0xff]
  %v25 = vld [vmem:[%s1 + $0x30] sm:$0xff]
  %v26 = vld [vmem:[%s1 + $0x38] sm:$0xff]
  %v27 = vld [vmem:[%s2] sm:$0xff]
  %v28 = vld [vmem:[%s2 + $0x8] sm:$0xff]
  %v29 = vld [vmem:[%s2 + $0x10] sm:$0xff]
  %v30 = vld [vmem:[%s2 + $0x18] sm:$0xff]
  %v31 = vld [vmem:[%s2 + $0x20] sm:$0x3]
  %vm32 = vcmask 523264
  %v34 = vsel %vm32, %v14, 0
  %v37 = vsel %vm32, %v15, 0
  %v40 = vsel %vm32, %v16, 0
  %v43 = vsel %vm32, %v17, 0
  %v46 = vsel %vm32, %v18, 0
  %48 = vmatpush.msra.mxu0 0.0
  %49 = vmatpush.msra.mxu0 0.0
  %50 = vmatpush.msra.mxu0 0.0
  %51 = vmatpush.msra.mxu0 0.0
  %52 = vmatpush.msra.mxu0 0.0
  %53 = vmatpush.msra.mxu0 0.0
  %54 = vmatpush.msra.mxu0 0.0
  %55 = vmatpush.msra.mxu0 0.0
  %56 = vmatpush.msra.mxu0 %v26
  %57 = vmatpush.msra.mxu0 %v25
  %58 = vmatpush.msra.mxu0 %v24
  %59 = vmatpush.msra.mxu0 %v23
  %60 = vmatpush.msra.mxu0 %v22
  %61 = vmatpush.msra.mxu0 %v21
  %62 = vmatpush.msra.mxu0 %v20
  %63 = vmatpush.msra.mxu0 %v19
  %64 = vmatmul.f32.gmra.mxu0 %v34
  %v65 = vpop.f32.mrf.mxu0
  %v66 = vadd.f32 %v27, %v65
  %67 = vmatmul.f32.gmra.mxu0 %v37
  %v68 = vpop.f32.mrf.mxu0
  %v69 = vadd.f32 %v28, %v68
  %70 = vmatmul.f32.gmra.mxu0 %v40
  %v71 = vpop.f32.mrf.mxu0
  %v72 = vadd.f32 %v29, %v71
  %73 = vmatmul.f32.gmra.mxu0 %v43
  %v74 = vpop.f32.mrf.mxu0
  %v75 = vadd.f32 %v30, %v74
  %76 = vmatmul.f32.gmra.mxu0 %v46
  %v77 = vpop.f32.mrf.mxu0
  %v78 = vadd.f32 %v31, %v77
  %79 = vdwg.mxu0
  %vm80 = vcmask 261120
  %81 = vst.msk [vmem:[%s3] sm:$0xff] %vm80, %v66
  %82 = vst.msk [vmem:[%s3 + $0x8] sm:$0xff] %vm80, %v69
  %83 = vst.msk [vmem:[%s3 + $0x10] sm:$0xff] %vm80, %v72
  %84 = vst.msk [vmem:[%s3 + $0x18] sm:$0xff] %vm80, %v75
  %vm85 = vcmask 254976
  %86 = vst.msk [vmem:[%s3 + $0x20] sm:$0x3] %vm85, %v78
  // Predicated region
  $region14: #{tpu_custom_call.1} parent=0 // pred_check
    _
  $region15: #{tpu_custom_call.1} parent=0 // pred_check_branch
    %88 = sbr.rel (0) target = $region17
  $region16: #{tpu_custom_call.1} parent=0 // pred_region
    _
  $region17: #{tpu_custom_call.1} parent=0 // pred_fallthru
    _
  // Predicated region
  $region18: #{tpu_custom_call.1} parent=0 // pred_check
    _
  $region19: #{tpu_custom_call.1} parent=0 // pred_check_branch
    %90 = sbr.rel (0) target = $region21
  $region20: #{tpu_custom_call.1} parent=0 // pred_region
    _
  $region21: #{tpu_custom_call.1} parent=0 // pred_fallthru
    _

</llo_original>
